<compile_context>
chip_gen: v7x
topology: tpu7x:2x2x1
jax: 0.10.0
libtpu: 0.0.40
codegen_flags: <defaults>
</compile_context>

<pallas_src>
import jax
import jax.numpy as jnp
from jax.experimental import pallas as pl
from jax.experimental.pallas import tpu as pltpu


def ffn_kernel(x_ref, w1t_ref, b1_ref, w2t_ref, b2_ref, o_ref, acc_ref):
    """One grid step == (row tile i, hidden-dim chunk h).

    x_ref:   (bm, C)   bf16 input rows            (same block for all h)
    w1t_ref: (C, th)   bf16 Linear1 weight chunk  (transposed)
    b1_ref:  (1, th)   f32  Linear1 bias chunk
    w2t_ref: (th, C)   bf16 Linear2 weight chunk  (transposed)
    b2_ref:  (1, C)    f32  Linear2 bias          (grid-invariant)
    o_ref:   (bm, C)   output rows                (resident across h)
    acc_ref: (bm, C)   f32 VMEM accumulator
    """
    h = pl.program_id(1)

    @pl.when(h == 0)
    def _():
        # Fold the second bias into the accumulator init (epilogue add saved).
        acc_ref[...] = jnp.broadcast_to(
            b2_ref[...].astype(jnp.float32), acc_ref.shape)

    # Linear1 chunk (bf16 MXU operands, f32 accumulation) + bias + ReLU.
    h1 = jnp.dot(x_ref[...], w1t_ref[...], preferred_element_type=jnp.float32)
    h1 = jnp.maximum(h1 + b1_ref[...].astype(jnp.float32), 0.0)

    # Linear2 partial contribution of this hidden chunk: (bm, th) @ (th, C).
    acc_ref[...] += jnp.dot(h1.astype(w2t_ref.dtype), w2t_ref[...],
                            preferred_element_type=jnp.float32)

    @pl.when(h == pl.num_programs(1) - 1)
    def _():
        # Single lane-dense store of the whole output tile.
        o_ref[...] = acc_ref[...].astype(o_ref.dtype)


def _choose_block_m(M):
    # Prefer large MXU/HBM-friendly row tiles (256-512); for small M take the
    # whole thing rounded up to a sublane multiple (rows are padded to match).
    if M <= 512:
        return max(8, ((M + 7) // 8) * 8)
    return 512


def _choose_block_h(H):
    # Hidden-dim streaming chunk: lane-aligned, 256+ preferred for the v6e
    # 256x256 MXU, falling back to the full (small) extent.
    for th in (512, 256, 128):
        if H % th == 0:
            return th
    return H


def _vmem_limit_bytes(block_m, block_h, C):
    bf16, f32 = 2, 4
    per_step = (block_m * C * bf16          # x tile
                + C * block_h * bf16        # w1t chunk
                + block_h * f32             # b1 chunk
                + block_h * C * bf16        # w2t chunk
                + C * f32                   # b2
                + block_m * C * f32)        # output tile
    total = 2 * per_step + block_m * C * f32   # double buffering + accumulator
    # Generous headroom, clamped to a range that is safe on every generation
    # (v5e default scoped limit 16 MiB; v7x physical VMEM 64 MiB).
    return int(min(64 << 20, max(16 << 20, 4 * total)))


def prepare_ffn_params(w1, b1, w2, b2):
    """One-time parameter prep; keep transposes/casts out of the hot path.

    w1: (H, C) PyTorch Linear layout, w2: (C, H); H = 4 * d_model.
    Returns bf16 transposed weights and f32 row-vector biases.
    """
    H, C = w1.shape
    assert w2.shape == (C, H) and b1.shape == (H,) and b2.shape == (C,)
    w1t = jnp.asarray(w1.T, dtype=jnp.bfloat16)        # (C, H)
    w2t = jnp.asarray(w2.T, dtype=jnp.bfloat16)        # (H, C)
    b1r = jnp.asarray(b1, dtype=jnp.float32).reshape(1, H)
    b2r = jnp.asarray(b2, dtype=jnp.float32).reshape(1, C)
    return w1t, b1r, w2t, b2r


def feed_forward(x, w1t, b1r, w2t, b2r):
    """x: (..., d_model); w1t: (C, 4C) bf16; w2t: (4C, C) bf16; biases f32."""
    orig_shape = x.shape
    orig_dtype = x.dtype
    C = orig_shape[-1]
    H = w1t.shape[1]
    assert w1t.shape == (C, H) and w2t.shape == (H, C)
    assert b1r.shape == (1, H) and b2r.shape == (1, C)

    M = 1
    for d in orig_shape[:-1]:
        M *= d

    block_m = _choose_block_m(M)
    block_h = _choose_block_h(H)

    # Pad rows up to the tile instead of degrading to tiny tiles for odd M.
    M_pad = pl.cdiv(M, block_m) * block_m
    x2 = x.reshape(M, C).astype(jnp.bfloat16)
    if M_pad != M:
        x2 = jnp.pad(x2, ((0, M_pad - M), (0, 0)))

    grid = (M_pad // block_m, H // block_h)   # reduction axis (H) last

    cost = pl.CostEstimate(
        flops=4 * M_pad * C * H,
        transcendentals=0,
        bytes_accessed=(x2.size * 2 + w1t.size * 2 + w2t.size * 2
                        + b1r.size * 4 + b2r.size * 4 + M_pad * C * 4),
    )

    out = pl.pallas_call(
        ffn_kernel,
        out_shape=jax.ShapeDtypeStruct((M_pad, C), orig_dtype),
        grid=grid,
        in_specs=[
            pl.BlockSpec((block_m, C), lambda i, h: (i, 0)),   # x rows
            pl.BlockSpec((C, block_h), lambda i, h: (0, h)),   # w1t chunk
            pl.BlockSpec((1, block_h), lambda i, h: (0, h)),   # b1 chunk
            pl.BlockSpec((block_h, C), lambda i, h: (h, 0)),   # w2t chunk
            pl.BlockSpec((1, C), lambda i, h: (0, 0)),         # b2 (invariant)
        ],
        out_specs=pl.BlockSpec((block_m, C), lambda i, h: (i, 0)),
        scratch_shapes=[pltpu.VMEM((block_m, C), jnp.float32)],
        compiler_params=pltpu.CompilerParams(
            dimension_semantics=("parallel", "arbitrary"),
            vmem_limit_bytes=_vmem_limit_bytes(block_m, block_h, C),
        ),
        cost_estimate=cost,
    )(x2, w1t, b1r, w2t, b2r)

    return out[:M].reshape(orig_shape)


def reference_ffn(x, w1, b1, w2, b2):
    """Pure-JAX (f32) re-implementation of the PyTorch forward, for validation."""
    h = jnp.maximum(x @ w1.T + b1, 0.0)
    return h @ w2.T + b2


if __name__ == "__main__":
    # Small shapes consistent with the module: batch=2, seq=8, d_model=32.
    B, T, d_model = 2, 8, 32
    hidden = 4 * d_model

    key = jax.random.PRNGKey(0)
    kx, kw1, kb1, kw2, kb2 = jax.random.split(key, 5)

    x = jax.random.normal(kx, (B, T, d_model), dtype=jnp.float32)
    # Deterministic synthetic parameters (PyTorch Linear layouts: (out, in)).
    w1 = 0.05 * jax.random.normal(kw1, (hidden, d_model), dtype=jnp.float32)
    b1 = 0.01 * jax.random.normal(kb1, (hidden,), dtype=jnp.float32)
    w2 = 0.05 * jax.random.normal(kw2, (d_model, hidden), dtype=jnp.float32)
    b2 = 0.01 * jax.random.normal(kb2, (d_model,), dtype=jnp.float32)

    params = prepare_ffn_params(w1, b1, w2, b2)   # one-time transpose + bf16 cast
    out = feed_forward(x, *params)
    out = jax.block_until_ready(out)

    ref = reference_ffn(x, w1, b1, w2, b2)
    assert out.shape == (B, T, d_model)
    # Tolerance loosened vs. the f32 version: MXU operands are bf16 (f32 accum).
    assert jnp.allclose(out, ref, atol=2e-2, rtol=2e-2), "mismatch vs reference"

    print("KERNEL_OK")
</pallas_src>

<mosaic_0001>
module attributes {stable_mosaic.version = 11 : i64} {
  func.func @ffn_kernel(%arg0: i32, %arg1: i32, %arg2: memref<16x32xbf16, #tpu.memory_space<vmem>>, %arg3: memref<32x128xbf16, #tpu.memory_space<vmem>>, %arg4: memref<1x128xf32, #tpu.memory_space<vmem>>, %arg5: memref<128x32xbf16, #tpu.memory_space<vmem>>, %arg6: memref<1x32xf32, #tpu.memory_space<vmem>>, %arg7: memref<16x32xf32, #tpu.memory_space<vmem>>, %arg8: memref<16x32xf32, #tpu.memory_space<vmem>>) attributes {dimension_semantics = [#tpu.dimension_semantics<parallel>, #tpu.dimension_semantics<arbitrary>], iteration_bounds = array<i64: 1, 1>, scalar_prefetch = 0 : i64, scratch_operands = 1 : i64, tpu.core_type = #tpu.core_type<tc>, window_params = [{transform_indices = @transform_0, window_bounds = array<i64: 16, 32>}, {transform_indices = @transform_1, window_bounds = array<i64: 32, 128>}, {transform_indices = @transform_2, window_bounds = array<i64: 1, 128>}, {transform_indices = @transform_3, window_bounds = array<i64: 128, 32>}, {pipeline_mode = #tpu.pipeline_mode<synchronous>, transform_indices = @transform_4, window_bounds = array<i64: 1, 32>}, {transform_indices = @transform_5, window_bounds = array<i64: 16, 32>}]} {
    %c0_i32 = arith.constant 0 : i32
    %0 = arith.cmpi eq, %arg1, %c0_i32 : i32
    %1 = arith.extui %0 : i1 to i32
    %c0_i32_0 = arith.constant 0 : i32
    %2 = arith.cmpi ne, %1, %c0_i32_0 : i32
    scf.if %2 {
      %c0_16 = arith.constant 0 : index
      %c0_17 = arith.constant 0 : index
      %20 = vector.load %arg6[%c0_16, %c0_17] : memref<1x32xf32, #tpu.memory_space<vmem>>, vector<1x32xf32>
      %21 = vector.shape_cast %20 : vector<1x32xf32> to vector<1x32xf32>
      %22 = vector.broadcast %21 : vector<1x32xf32> to vector<16x32xf32>
      %c0_18 = arith.constant 0 : index
      %c0_19 = arith.constant 0 : index
      %23 = vector.load %arg8[%c0_18, %c0_19] : memref<16x32xf32, #tpu.memory_space<vmem>>, vector<16x32xf32>
      tpu.vector_store %arg8[%c0_18, %c0_19], %22 {strides = array<i32>} : memref<16x32xf32, #tpu.memory_space<vmem>>, vector<16x32xf32>,
    } else {
    }
    %c0 = arith.constant 0 : index
    %c0_1 = arith.constant 0 : index
    %3 = vector.load %arg2[%c0, %c0_1] : memref<16x32xbf16, #tpu.memory_space<vmem>>, vector<16x32xbf16>
    %c0_2 = arith.constant 0 : index
    %c0_3 = arith.constant 0 : index
    %4 = vector.load %arg3[%c0_2, %c0_3] : memref<32x128xbf16, #tpu.memory_space<vmem>>, vector<32x128xbf16>
    %cst = arith.constant dense<0.000000e+00> : vector<16x128xf32>
    %5 = tpu.matmul %3, %4, %cst {dimension_numbers = #tpu.dot_dimension_numbers<[1], [0], [0], [1], [0, 0, 1, 1], [], []>} : vector<16x32xbf16>, vector<32x128xbf16>, vector<16x128xf32> -> vector<16x128xf32>
    %c0_4 = arith.constant 0 : index
    %c0_5 = arith.constant 0 : index
    %6 = vector.load %arg4[%c0_4, %c0_5] : memref<1x128xf32, #tpu.memory_space<vmem>>, vector<1x128xf32>
    %7 = vector.broadcast %6 : vector<1x128xf32> to vector<16x128xf32>
    %8 = arith.addf %5, %7 : vector<16x128xf32>
    %cst_6 = arith.constant 0.000000e+00 : f32
    %9 = vector.broadcast %cst_6 : f32 to vector<16x128xf32>
    %10 = arith.maximumf %8, %9 : vector<16x128xf32>
    %c0_7 = arith.constant 0 : index
    %c0_8 = arith.constant 0 : index
    %11 = vector.load %arg8[%c0_7, %c0_8] : memref<16x32xf32, #tpu.memory_space<vmem>>, vector<16x32xf32>
    %12 = arith.truncf %10 : vector<16x128xf32> to vector<16x128xbf16>
    %c0_9 = arith.constant 0 : index
    %c0_10 = arith.constant 0 : index
    %13 = vector.load %arg5[%c0_9, %c0_10] : memref<128x32xbf16, #tpu.memory_space<vmem>>, vector<128x32xbf16>
    %cst_11 = arith.constant dense<0.000000e+00> : vector<16x32xf32>
    %14 = tpu.matmul %12, %13, %cst_11 {dimension_numbers = #tpu.dot_dimension_numbers<[1], [0], [0], [1], [0, 0, 1, 1], [], []>} : vector<16x128xbf16>, vector<128x32xbf16>, vector<16x32xf32> -> vector<16x32xf32>
    %15 = arith.addf %11, %14 : vector<16x32xf32>
    %c0_12 = arith.constant 0 : index
    %c0_13 = arith.constant 0 : index
    %16 = vector.load %arg8[%c0_12, %c0_13] : memref<16x32xf32, #tpu.memory_space<vmem>>, vector<16x32xf32>
    tpu.vector_store %arg8[%c0_12, %c0_13], %15 {strides = array<i32>} : memref<16x32xf32, #tpu.memory_space<vmem>>, vector<16x32xf32>,
    %c0_i32_14 = arith.constant 0 : i32
    %17 = arith.cmpi eq, %arg1, %c0_i32_14 : i32
    %18 = arith.extui %17 : i1 to i32
    %c0_i32_15 = arith.constant 0 : i32
    %19 = arith.cmpi ne, %18, %c0_i32_15 : i32
    scf.if %19 {
      %c0_16 = arith.constant 0 : index
      %c0_17 = arith.constant 0 : index
      %20 = vector.load %arg8[%c0_16, %c0_17] : memref<16x32xf32, #tpu.memory_space<vmem>>, vector<16x32xf32>
      %c0_18 = arith.constant 0 : index
      %c0_19 = arith.constant 0 : index
      %21 = vector.load %arg7[%c0_18, %c0_19] : memref<16x32xf32, #tpu.memory_space<vmem>>, vector<16x32xf32>
      tpu.vector_store %arg7[%c0_18, %c0_19], %20 {strides = array<i32>} : memref<16x32xf32, #tpu.memory_space<vmem>>, vector<16x32xf32>,
    } else {
    }
    return
  }
  func.func @transform_0(%arg0: i32, %arg1: i32) -> (i32, i32) {
    %c0_i32 = arith.constant 0 : i32
    %c0_i32_0 = arith.constant 0 : i32
    return %arg0, %c0_i32 : i32, i32
  }
  func.func @transform_1(%arg0: i32, %arg1: i32) -> (i32, i32) {
    %c0_i32 = arith.constant 0 : i32
    %c0_i32_0 = arith.constant 0 : i32
    return %c0_i32, %arg1 : i32, i32
  }
  func.func @transform_2(%arg0: i32, %arg1: i32) -> (i32, i32) {
    %c0_i32 = arith.constant 0 : i32
    %c0_i32_0 = arith.constant 0 : i32
    return %c0_i32, %arg1 : i32, i32
  }
  func.func @transform_3(%arg0: i32, %arg1: i32) -> (i32, i32) {
    %c0_i32 = arith.constant 0 : i32
    %c0_i32_0 = arith.constant 0 : i32
    return %arg1, %c0_i32 : i32, i32
  }
  func.func @transform_4(%arg0: i32, %arg1: i32) -> (i32, i32) {
    %c0_i32 = arith.constant 0 : i32
    %c0_i32_0 = arith.constant 0 : i32
    %c0_i32_1 = arith.constant 0 : i32
    return %c0_i32, %c0_i32_0 : i32, i32
  }
  func.func @transform_5(%arg0: i32, %arg1: i32) -> (i32, i32) {
    %c0_i32 = arith.constant 0 : i32
    %c0_i32_0 = arith.constant 0 : i32
    return %arg0, %c0_i32 : i32, i32
  }
}

</mosaic_0001>

<llo_original>
// kernel: tpu_custom_call.1
$region0: #{tpu_custom_call.1}
  #allocation0 [shape = 'u32[]', space=smem, size = 0x4, offset = 0x4, fixed_abs, tag = 'smem constant byte address 0x4 - core index']
  #allocation1 [shape = 'u32[144,128]{1,0:T(1,128)}', space=vmem, size = 0x12000, scoped, tag = 'internal scratch']
  #allocation2 [shape = 'f32[16,32]{1,0:T(8,128)}', space=vmem, size = 0x2000, scoped, tag = 'scratch operand']
  %s0 = inlined_call_operand.vmem [shape: bf16[16,32], index: 0, kind: input, shape index: {}]
  %s1 = inlined_call_operand.vmem [shape: bf16[32,128], index: 1, kind: input, shape index: {}]
  %s2 = inlined_call_operand.vmem [shape: f32[1,128], index: 2, kind: input, shape index: {}]
  %s3 = inlined_call_operand.vmem [shape: bf16[128,32], index: 3, kind: input, shape index: {}]
  %s4 = inlined_call_operand.vmem [shape: f32[1,32], index: 4, kind: input, shape index: {}]
  %s5 = inlined_call_operand.hbm [shape: f32[16,32], index: 5, kind: output, shape index: {}]
  %s6 = sld [smem:[#allocation0]]
  $region38: #{tpu_custom_call.1} parent=0
    _
  %s8 = ssub.s32 1, %s6
  %s9 = scalar_select 0, %s8, %s6
  $region1: #{tpu_custom_call.1} parent=0
    #allocation3 [shape = 'u8[8192]{0}', space=vmem, size = 0x2000, scoped, tag = 'output window, operand 0, single buffered']
    #allocation4 [shape = 's32[1]{0}', space=sflag, size = 0x4, scoped, tag = 'scoped memory for tpu_custom_call.1']
    %10 = vsyncpa [#allocation4], 0
    // Predicated region
    $region2: #{tpu_custom_call.1} parent=1 // pred_check
      _
    $region3: #{tpu_custom_call.1} parent=1 // pred_check_branch
      %12 = sbr.rel (0) target = $region5
    $region4: #{tpu_custom_call.1} parent=1 // pred_region
      _
    $region5: #{tpu_custom_call.1} parent=1 // pred_fallthru
      _
    // Predicated region
    $region6: #{tpu_custom_call.1} parent=1 // pred_check
      _
    $region7: #{tpu_custom_call.1} parent=1 // pred_check_branch
      %14 = sbr.rel (0) target = $region9
    $region8: #{tpu_custom_call.1} parent=1 // pred_region
      _
    $region9: #{tpu_custom_call.1} parent=1 // pred_fallthru
      _
    // Predicated region
    $region10: #{tpu_custom_call.1} parent=1 // pred_check
      _
    $region11: #{tpu_custom_call.1} parent=1 // pred_check_branch
      %16 = sbr.rel (0) target = $region13
    $region12: #{tpu_custom_call.1} parent=1 // pred_region
      _
    $region13: #{tpu_custom_call.1} parent=1 // pred_fallthru
      _
    // Predicated region
    $region14: #{tpu_custom_call.1} parent=1 // pred_check
      _
    $region15: #{tpu_custom_call.1} parent=1 // pred_check_branch
      %18 = sbr.rel (0) target = $region17
    $region16: #{tpu_custom_call.1} parent=1 // pred_region
      _
    $region17: #{tpu_custom_call.1} parent=1 // pred_fallthru
      _
    // Predicated region
    $region18: #{tpu_custom_call.1} parent=1 // pred_check
      _
    $region19: #{tpu_custom_call.1} parent=1 // pred_check_branch
      %20 = sbr.rel (0) target = $region21
    $region20: #{tpu_custom_call.1} parent=1 // pred_region
      _
    $region21: #{tpu_custom_call.1} parent=1 // pred_fallthru
      _
    %p22 = scmp.eq.s32.totalorder 0, 0
    // Predicated region
    $region22: #{tpu_custom_call.1} parent=1 // pred_check
      %p23 = pneg %p22
    $region23: #{tpu_custom_call.1} parent=1 // pred_check_branch
      %25 = sbr.rel (%p23) target = $region25
    $region24: #{tpu_custom_call.1} parent=1 // pred_region
      %v26 = vld [vmem:[%s4] sm:$0x1]
      %v28 = vlaneseq
      %v29 = vshrl.u32 %v28, 7
      %v30 = vsub.s32 0, %v29
      %v31 = vrot.slane %v26, %v30
      %vm33 = vcmask 261120
      %34 = vst.msk [vmem:[#allocation2] sm:$0xff] %vm33, %v31
      %35 = vst.msk [vmem:[#allocation2 + $0x8] sm:$0xff] %vm33, %v31
    $region25: #{tpu_custom_call.1} parent=1 // pred_fallthru
      _
    %v36 = vld [vmem:[%s0] sm:$0xf]
    %v37 = vld [vmem:[%s0 + $0x4] sm:$0xf]
    %v38 = vld [vmem:[%s1] sm:$0xf]
    %v39 = vld [vmem:[%s1 + $0x4] sm:$0xf]
    %v40 = vld [vmem:[%s1 + $0x8] sm:$0xf]
    %v41 = vld [vmem:[%s1 + $0xc] sm:$0xf]
    %v42 = vld [vmem:[%s2] sm:$0x1]
    %v44 = vlaneseq
    %v45 = vshrl.u32 %v44, 7
    %v46 = vsub.s32 0, %v45
    %v47 = vrot.slane %v42, %v46
    %v51 = vunpack.c.l.b16 %v36
    %v52 = vunpack.c.l.b16 %v37
    %v53 = vpack.c.b16 %v52, %v51
    %v58 = vunpack.c.l.b16 %v38
    %v59 = vunpack.c.l.b16 %v39
    %v60 = vunpack.c.l.b16 %v40
    %v61 = vunpack.c.l.b16 %v41
    %v62 = vpack.c.b16 %v59, %v58
    %v63 = vpack.c.b16 %v61, %v60
    %vm66 = vcmask 261120
    %v68 = vsel %vm66, %v53, 0
    %70 = vmatprep.subr.bf16.mxu0 0
    %71 = vmatpush1.bf16.msra.mxu0 %v62
    %72 = vmatprep.subr.bf16.mxu0 0
    %73 = vmatpush1.bf16.msra.mxu0 %v63
    %74 = vmatprep.subr.bf16.mxu0 0
    %75 = vmatpush1.bf16.msra.mxu0 0
    %76 = vmatprep.subr.bf16.mxu0 0
    %77 = vmatpush1.bf16.msra.mxu0 0
    %78 = vmatprep.subr.bf16.mxu0 0
    %79 = vmatpush1.bf16.msra.mxu0 0
    %80 = vmatprep.subr.bf16.mxu0 0
    %81 = vmatpush1.bf16.msra.mxu0 0
    %82 = vmatprep.subr.bf16.mxu0 0
    %83 = vmatpush1.bf16.msra.mxu0 0
    %84 = vmatprep.subr.bf16.mxu0 0
    %85 = vmatpush1.bf16.msra.mxu0 0
    %86 = vmatprep.subr.bf16.mxu0 0
    %87 = vmatpush1.bf16.msra.mxu0 0
    %88 = vmatprep.subr.bf16.mxu0 0
    %89 = vmatpush1.bf16.msra.mxu0 0
    %90 = vmatprep.subr.bf16.mxu0 0
    %91 = vmatpush1.bf16.msra.mxu0 0
    %92 = vmatprep.subr.bf16.mxu0 0
    %93 = vmatpush1.bf16.msra.mxu0 0
    %94 = vmatprep.subr.bf16.mxu0 0
    %95 = vmatpush1.bf16.msra.mxu0 0
    %96 = vmatprep.subr.bf16.mxu0 0
    %97 = vmatpush1.bf16.msra.mxu0 0
    %98 = vmatprep.subr.bf16.mxu0 0
    %99 = vmatpush1.bf16.msra.mxu0 0
    %100 = vmatprep.subr.bf16.mxu0 0
    %101 = vmatpush1.bf16.msra.mxu0 0
    %102 = vmatprep.mubr.bf16.mxu0 0
    %103 = vmatmul.mubr.bf16.gmra.mrb[0].mxu0 %v68
    %v104 = vpop.f32.mrb[0].mxu0
    %v105 = vadd.f32 %v47, %v104
    %v106 = vpop.f32.mrb[0].mxu0
    %v107 = vpop.f32.mrb[0].mxu0
    %v108 = vadd.f32 %v47, %v107
    %v109 = vpop.f32.mrb[0].mxu0
    %110 = vdwg.mxu0
    %v111 = vmax.f32 %v105, 0.0
    %v112 = vmax.f32 %v108, 0.0
    %v113 = vld [vmem:[#allocation2] sm:$0xff]
    %v114 = vld [vmem:[#allocation2 + $0x8] sm:$0xff]
    %v115 = vpack.c.bf16 %v112, %v111
    %v116 = vld [vmem:[%s3] sm:$0xf]
    %v117 = vld [vmem:[%s3 + $0x4] sm:$0xf]
    %v118 = vld [vmem:[%s3 + $0x8] sm:$0xf]
    %v119 = vld [vmem:[%s3 + $0xc] sm:$0xf]
    %v120 = vld [vmem:[%s3 + $0x10] sm:$0xf]
    %v121 = vld [vmem:[%s3 + $0x14] sm:$0xf]
    %v122 = vld [vmem:[%s3 + $0x18] sm:$0xf]
    %v123 = vld [vmem:[%s3 + $0x1c] sm:$0xf]
    %v124 = vld [vmem:[%s3 + $0x20] sm:$0xf]
    %v125 = vld [vmem:[%s3 + $0x24] sm:$0xf]
    %v126 = vld [vmem:[%s3 + $0x28] sm:$0xf]
    %v127 = vld [vmem:[%s3 + $0x2c] sm:$0xf]
    %v128 = vld [vmem:[%s3 + $0x30] sm:$0xf]
    %v129 = vld [vmem:[%s3 + $0x34] sm:$0xf]
    %v130 = vld [vmem:[%s3 + $0x38] sm:$0xf]
    %v131 = vld [vmem:[%s3 + $0x3c] sm:$0xf]
    %v148 = vunpack.c.l.b16 %v116
    %v149 = vunpack.c.l.b16 %v117
    %v150 = vunpack.c.l.b16 %v118
    %v151 = vunpack.c.l.b16 %v119
    %v152 = vunpack.c.l.b16 %v120
    %v153 = vunpack.c.l.b16 %v121
    %v154 = vunpack.c.l.b16 %v122
    %v155 = vunpack.c.l.b16 %v123
    %v156 = vunpack.c.l.b16 %v124
    %v157 = vunpack.c.l.b16 %v125
    %v158 = vunpack.c.l.b16 %v126
    %v159 = vunpack.c.l.b16 %v127
    %v160 = vunpack.c.l.b16 %v128
    %v161 = vunpack.c.l.b16 %v129
    %v162 = vunpack.c.l.b16 %v130
    %v163 = vunpack.c.l.b16 %v131
    %v164 = vpack.c.b16 %v149, %v148
    %v165 = vpack.c.b16 %v151, %v150
    %v166 = vpack.c.b16 %v153, %v152
    %v167 = vpack.c.b16 %v155, %v154
    %v168 = vpack.c.b16 %v157, %v156
    %v169 = vpack.c.b16 %v159, %v158
    %v170 = vpack.c.b16 %v161, %v160
    %v171 = vpack.c.b16 %v163, %v162
    %180 = vmatprep.subr.bf16.mxu0 0
    %181 = vmatpush1.bf16.msra.mxu0 %v164
    %182 = vmatprep.subr.bf16.mxu0 0
    %183 = vmatpush1.bf16.msra.mxu0 %v165
    %184 = vmatprep.subr.bf16.mxu0 0
    %185 = vmatpush1.bf16.msra.mxu0 %v166
    %186 = vmatprep.subr.bf16.mxu0 0
    %187 = vmatpush1.bf16.msra.mxu0 %v167
    %188 = vmatprep.subr.bf16.mxu0 0
    %189 = vmatpush1.bf16.msra.mxu0 %v168
    %190 = vmatprep.subr.bf16.mxu0 0
    %191 = vmatpush1.bf16.msra.mxu0 %v169
    %192 = vmatprep.subr.bf16.mxu0 0
    %193 = vmatpush1.bf16.msra.mxu0 %v170
    %194 = vmatprep.subr.bf16.mxu0 0
    %195 = vmatpush1.bf16.msra.mxu0 %v171
    %196 = vmatprep.subr.bf16.mxu0 0
    %197 = vmatpush1.bf16.msra.mxu0 0
    %198 = vmatprep.subr.bf16.mxu0 0
    %199 = vmatpush1.bf16.msra.mxu0 0
    %200 = vmatprep.subr.bf16.mxu0 0
    %201 = vmatpush1.bf16.msra.mxu0 0
    %202 = vmatprep.subr.bf16.mxu0 0
    %203 = vmatpush1.bf16.msra.mxu0 0
    %204 = vmatprep.subr.bf16.mxu0 0
    %205 = vmatpush1.bf16.msra.mxu0 0
    %206 = vmatprep.subr.bf16.mxu0 0
    %207 = vmatpush1.bf16.msra.mxu0 0
    %208 = vmatprep.subr.bf16.mxu0 0
    %209 = vmatpush1.bf16.msra.mxu0 0
    %210 = vmatprep.subr.bf16.mxu0 0
    %211 = vmatpush1.bf16.msra.mxu0 0
    %212 = vmatprep.mubr.bf16.mxu0 0
    %213 = vmatmul.mubr.bf16.gmra.mrb[0].mxu0 %v115
    %v214 = vpop.f32.mrb[0].mxu0
    %v215 = vadd.f32 0.0, %v214
    %v216 = vpop.f32.mrb[0].mxu0
    %v217 = vpop.f32.mrb[0].mxu0
    %v218 = vadd.f32 0.0, %v217
    %v219 = vpop.f32.mrb[0].mxu0
    %220 = vdwg.mxu0
    %v221 = vadd.f32 %v113, %v215
    %v222 = vadd.f32 %v114, %v218
    %223 = vst.msk [vmem:[#allocation2] sm:$0xff] %vm66, %v221
    %224 = vst.msk [vmem:[#allocation2 + $0x8] sm:$0xff] %vm66, %v222
    // Predicated region
    $region26: #{tpu_custom_call.1} parent=1 // pred_check
      %p225 = pneg %p22
    $region27: #{tpu_custom_call.1} parent=1 // pred_check_branch
      %227 = sbr.rel (%p225) target = $region29
    $region28: #{tpu_custom_call.1} parent=1 // pred_region
      %v228 = vld [vmem:[#allocation2] sm:$0xff]
      %v229 = vld [vmem:[#allocation2 + $0x8] sm:$0xff]
      %230 = vst.msk [vmem:[#allocation3] sm:$0xff] %vm66, %v228
      %231 = vst.msk [vmem:[#allocation3 + $0x8] sm:$0xff] %vm66, %v229
    $region29: #{tpu_custom_call.1} parent=1 // pred_fallthru
      _
    // Predicated region
    $region30: #{tpu_custom_call.1} parent=1 // pred_check
      _
    $region31: #{tpu_custom_call.1} parent=1 // pred_check_branch
      %233 = sbr.rel (0) target = $region33
    $region32: #{tpu_custom_call.1} parent=1 // pred_region
      %s235 = ssub.s32 256, 256
      %236 = vsyncadd [#allocation4], %s235
      %s237 = sshll.u32 [#allocation3], 4
      %s238 = int_to_ptr.vmem [resolvable:$true] %s237
      %243 = dma.vmem_to_hbm [thread:$0]  %s238, 256, %s5, [#allocation4], 128, 128, 8
    $region33: #{tpu_custom_call.1} parent=1 // pred_fallthru
      _
    // Predicated region
    $region34: #{tpu_custom_call.1} parent=1 // pred_check
      _
    $region35: #{tpu_custom_call.1} parent=1 // pred_check_branch
      %245 = sbr.rel (0) target = $region37
    $region36: #{tpu_custom_call.1} parent=1 // pred_region
      %246 = dma.done [#allocation4], 256
    $region37: #{tpu_custom_call.1} parent=1 // pred_fallthru
      _
    %247 = vsyncpa [#allocation4], 1

</llo_original>
